<compile_context>
chip_gen: v5e
topology: v5e:2x2
jax: 0.10.0
libtpu: 0.0.40
codegen_flags: <defaults>
</compile_context>

<pallas_src>
import functools

import jax
import jax.numpy as jnp
from jax.experimental import pallas as pl
from jax.experimental.pallas import tpu as pltpu

EPS = 1e-5  # torch.nn.LayerNorm default


def _layernorm(x, gamma, beta):
    mean = jnp.mean(x, axis=-1, keepdims=True)
    var = jnp.mean(jnp.square(x - mean), axis=-1, keepdims=True)
    return (x - mean) * jax.lax.rsqrt(var + EPS) * gamma + beta


def _gelu(x):
    # Exact-GELU semantics (torch.nn.GELU default uses erf).  erf via the A&S 7.1.26
    # rational approximation; the 1/(1+c*a) goes to the EUP reciprocal (approx=True).
    # Kernel-only helper (pl.reciprocal must run inside a Pallas kernel).
    z = x * 0.7071067811865476
    a = jnp.abs(z)
    t = pl.reciprocal(1.0 + 0.3275911 * a, approx=True)
    poly = t * (0.254829592 + t * (-0.284496736 + t * (1.421413741
             + t * (-1.453152027 + t * 1.061405429))))
    erf_abs = 1.0 - poly * jnp.exp(-(a * a))
    erf = jnp.where(z >= 0.0, erf_abs, -erf_abs)
    return 0.5 * x * (1.0 + erf)


def _bf16_matmul(x, w):
    # bf16 inputs, f32 accumulation (same convention in kernels and reference).
    return jnp.dot(x.astype(jnp.bfloat16), w, preferred_element_type=jnp.float32)


# ---------------------------------------------------------------------------
# Kernels
# ---------------------------------------------------------------------------
def patch_embed_kernel(xr_ref, g1_ref, b1_ref, w_ref, b_ref, g2_ref, b2_ref, o_ref):
    # Rows are batch-flattened (rows_pad, patch_dim): one lane/sublane-dense matmul.
    x = xr_ref[...].astype(jnp.float32)
    x = _layernorm(x, g1_ref[...], b1_ref[...])
    x = _bf16_matmul(x, w_ref[...]) + b_ref[...]
    x = _layernorm(x, g2_ref[...], b2_ref[...])
    o_ref[...] = x.astype(o_ref.dtype)


def transformer_kernel(tok_ref, cls_ref, pos_ref, wqkv_ref, wo_ref, bo_ref,
                       ga_ref, ba_ref, w1_ref, b1_ref, w2_ref, b2_ref,
                       gf_ref, bf_ref, hng_ref, hnb_ref, hw_ref, hb_ref,
                       logits_ref, x_scr, *, heads, dim_head, n_real):
    layer = pl.program_id(0)
    depth = pl.num_programs(0)
    B, N1p, dim = x_scr.shape
    inner = heads * dim_head
    dh = dim_head
    scale = dim_head ** -0.5

    # ---- layer 0: seed the VMEM-resident residual stream: [cls | tokens] + pos ----
    @pl.when(layer == 0)
    def _():
        cls = cls_ref[...].astype(jnp.float32)                 # (1, dim)
        pos = pos_ref[0].astype(jnp.float32)                   # (n_real, dim)
        x_scr[:, 0:1, :] = jnp.broadcast_to((cls + pos[0:1])[None], (B, 1, dim))
        x_scr[:, 1:n_real, :] = tok_ref[...].astype(jnp.float32) + pos[1:n_real][None]
        if N1p > n_real:                                        # zero the padded rows
            x_scr[:, n_real:, :] = jnp.zeros((B, N1p - n_real, dim), jnp.float32)

    # ---- per-layer weights (bf16): streamed from HBM once per layer ----
    wqkv = wqkv_ref[0]                                          # (dim, 3*inner)
    wo = wo_ref[0]                                              # (inner, dim)
    w1 = w1_ref[0]                                              # (dim, mlp_dim)
    w2 = w2_ref[0]                                              # (mlp_dim, dim)
    bo = bo_ref[0]
    ga, ba = ga_ref[0], ba_ref[0]
    b1v, b2v = b1_ref[0], b2_ref[0]
    gf, bfv = gf_ref[0], bf_ref[0]

    # Stack all batch rows: every weight matmul runs once on (B*N1p, .) tiles.
    x = x_scr[...].reshape(B * N1p, dim)                        # f32 residual stream

    # ---- attention:  x + attn_norm(attn(x)) ----
    qkv = _bf16_matmul(x, wqkv).reshape(B, N1p, 3 * inner)      # single QKV matmul

    if N1p > n_real:                                            # mask padded key columns
        col = jax.lax.broadcasted_iota(jnp.int32, (N1p, N1p), 1)
        kmask = jnp.where(col < n_real, 0.0, -1e30).astype(jnp.float32)
    else:
        kmask = None

    hv_rows = []
    for b in range(B):                                          # static unroll (small B)
        qkv_b = qkv[b]
        head_outs = []
        for h in range(heads):
            q = qkv_b[:, h * dh:(h + 1) * dh] * scale           # scale folded into q
            k = qkv_b[:, inner + h * dh:inner + (h + 1) * dh]
            v = qkv_b[:, 2 * inner + h * dh:2 * inner + (h + 1) * dh]
            dots = jax.lax.dot_general(q, k, (((1,), (1,)), ((), ())),
                                       preferred_element_type=jnp.float32)
            if kmask is not None:
                dots = dots + kmask
            dots = dots - jnp.max(dots, axis=-1, keepdims=True)
            p = jnp.exp(dots)
            attn = p * pl.reciprocal(jnp.sum(p, axis=-1, keepdims=True), approx=True)
            head_outs.append(jnp.dot(attn, v, preferred_element_type=jnp.float32))
        hv_rows.append(jnp.concatenate(head_outs, axis=-1))     # (N1p, inner)
    hv = jnp.concatenate(hv_rows, axis=0)                       # (B*N1p, inner)

    att = _bf16_matmul(hv, wo) + bo                             # one full-K W_o matmul
    x = x + _layernorm(att, ga, ba)

    # ---- feed-forward:  x + ff_norm(ff(x)) ----
    h1 = _gelu(_bf16_matmul(x, w1) + b1v)
    h2 = _bf16_matmul(h1, w2) + b2v
    x = x + _layernorm(h2, gf, bfv)

    x_scr[...] = x.reshape(B, N1p, dim)

    # ---- last layer: fused classifier head on the CLS row only ----
    @pl.when(layer == depth - 1)
    def _():
        cls_rows = x_scr[:, 0:1, :].reshape(B, dim)
        c = _layernorm(cls_rows, hng_ref[...], hnb_ref[...])
        logits_ref[...] = (jnp.dot(c, hw_ref[...], preferred_element_type=jnp.float32)
                           + hb_ref[...]).astype(logits_ref.dtype)


# ---------------------------------------------------------------------------
# Wrapper
# ---------------------------------------------------------------------------
def vit1d_forward(x, params, *, patch_size, heads, dim_head):
    B, C, L = x.shape
    N = L // patch_size
    N1 = N + 1
    N1p = ((N1 + 7) // 8) * 8                 # sublane-pad the token axis
    patch_dim = C * patch_size
    dim = params["pe_w"].shape[1]
    depth = params["wqkv"].shape[0]
    inner = heads * dim_head
    mlp_dim = params["w1"].shape[2]
    num_classes = params["head_w"].shape[1]

    # Generation-aware VMEM budget: 3/4 of physical, capped at 96 MiB
    # (v5e/v6e: 128 MiB -> 96 MiB; v7x: 64 MiB/TC -> 48 MiB).
    try:
        vmem_cap = int(pltpu.get_tpu_info().vmem_capacity_bytes)
    except Exception:
        vmem_cap = 64 * 1024 * 1024
    vmem_limit = min((vmem_cap * 3) // 4, 96 * 1024 * 1024)

    # einops 'b c (n p) -> b n (p c)', flattened to rows (plain-JAX layout glue).
    xr = x.reshape(B, C, N, patch_size).transpose(0, 2, 3, 1).reshape(B * N, patch_dim)

    # -------- patch embedding: LN -> Linear(bf16) -> LN over padded (B*N) rows --------
    rows = B * N
    row_tile = min(512, ((rows + 7) // 8) * 8)              # multiple-of-8 tile, <= 512
    rows_pad = int(pl.cdiv(rows, row_tile)) * row_tile
    if rows_pad != rows:
        xr = jnp.pad(xr, ((0, rows_pad - rows), (0, 0)))

    tokens = pl.pallas_call(
        patch_embed_kernel,
        out_shape=jax.ShapeDtypeStruct((rows_pad, dim), jnp.float32),
        grid_spec=pltpu.PrefetchScalarGridSpec(
            num_scalar_prefetch=0,
            grid=(rows_pad // row_tile,),
            in_specs=[
                pl.BlockSpec((row_tile, patch_dim), lambda i: (i, 0)),
                pl.BlockSpec((1, patch_dim), lambda i: (0, 0)),
                pl.BlockSpec((1, patch_dim), lambda i: (0, 0)),
                pl.BlockSpec((patch_dim, dim), lambda i: (0, 0)),
                pl.BlockSpec((1, dim), lambda i: (0, 0)),
                pl.BlockSpec((1, dim), lambda i: (0, 0)),
                pl.BlockSpec((1, dim), lambda i: (0, 0)),
            ],
            out_specs=pl.BlockSpec((row_tile, dim), lambda i: (i, 0)),
        ),
        compiler_params=pltpu.CompilerParams(
            dimension_semantics=("parallel",),
            vmem_limit_bytes=vmem_limit,
        ),
    )(xr, params["pe_g1"], params["pe_b1"], params["pe_w"], params["pe_b"],
      params["pe_g2"], params["pe_b2"])
    tokens = tokens[:rows].reshape(B, N, dim)                # layout glue (outside Mosaic)

    # -------- transformer + fused classifier: grid = (depth,) --------
    # Each layer's weights are fetched exactly once; the residual stream lives in a
    # VMEM scratch padded to N1p rows; only the (B, num_classes) logits hit HBM.
    layer_kernel = functools.partial(transformer_kernel,
                                     heads=heads, dim_head=dim_head, n_real=N1)

    def wspec3(shape):    # per-layer weight: block (1, *shape) indexed by layer
        return pl.BlockSpec((1,) + shape, lambda l: (l, 0, 0))

    def bc2(shape):       # layer-invariant 2-D input (fetched once)
        return pl.BlockSpec(shape, lambda l: (0, 0))

    def bc3(shape):       # layer-invariant 3-D input (fetched once)
        return pl.BlockSpec(shape, lambda l: (0, 0, 0))

    logits = pl.pallas_call(
        layer_kernel,
        out_shape=jax.ShapeDtypeStruct((B, num_classes), jnp.float32),
        grid_spec=pltpu.PrefetchScalarGridSpec(
            num_scalar_prefetch=0,
            grid=(depth,),
            in_specs=[
                bc3((B, N, dim)),                # patch tokens
                bc2((1, dim)),                   # cls token
                bc3((1, N1, dim)),               # positional embedding
                wspec3((dim, 3 * inner)),        # wqkv (bf16)
                wspec3((inner, dim)),            # wo   (bf16)
                wspec3((1, dim)),                # bo
                wspec3((1, dim)),                # attn_norm gamma
                wspec3((1, dim)),                # attn_norm beta
                wspec3((dim, mlp_dim)),          # w1   (bf16)
                wspec3((1, mlp_dim)),            # b1
                wspec3((mlp_dim, dim)),          # w2   (bf16)
                wspec3((1, dim)),                # b2
                wspec3((1, dim)),                # ff_norm gamma
                wspec3((1, dim)),                # ff_norm beta
                bc2((1, dim)),                   # head LayerNorm gamma
                bc2((1, dim)),                   # head LayerNorm beta
                bc2((dim, num_classes)),         # head weight (f32)
                bc2((1, num_classes)),           # head bias
            ],
            out_specs=pl.BlockSpec((B, num_classes), lambda l: (0, 0)),
            scratch_shapes=[pltpu.VMEM((B, N1p, dim), jnp.float32)],
        ),
        compiler_params=pltpu.CompilerParams(
            dimension_semantics=("arbitrary",),
            vmem_limit_bytes=vmem_limit,
        ),
    )(tokens, params["cls_token"], params["pos_embed"],
      params["wqkv"], params["wo"], params["bo"], params["ga"], params["ba"],
      params["w1"], params["b1"], params["w2"], params["b2"], params["gf"], params["bf"],
      params["hn_g"], params["hn_b"], params["head_w"], params["head_b"])
    return logits


# ---------------------------------------------------------------------------
# Deterministic parameter initialization (synthetic; shapes follow ViT1d.__init__)
# ---------------------------------------------------------------------------
def init_params(key, *, channels, seq_len, patch_size, num_classes, dim, depth,
                heads, dim_head, mlp_dim):
    N = seq_len // patch_size
    patch_dim = channels * patch_size
    inner = heads * dim_head
    ks = jax.random.split(key, 8)

    def w(k, shape, scale=0.02, dtype=jnp.float32):
        return (scale * jax.random.normal(k, shape)).astype(dtype)

    bf16 = jnp.bfloat16
    p = {}
    # patch_embed: LayerNorm(patch_dim), Linear(patch_dim, dim) [bf16], LayerNorm(dim)
    p["pe_g1"] = jnp.ones((1, patch_dim), jnp.float32)
    p["pe_b1"] = jnp.zeros((1, patch_dim), jnp.float32)
    p["pe_w"] = w(ks[0], (patch_dim, dim), dtype=bf16)
    p["pe_b"] = jnp.zeros((1, dim), jnp.float32)
    p["pe_g2"] = jnp.ones((1, dim), jnp.float32)
    p["pe_b2"] = jnp.zeros((1, dim), jnp.float32)
    # cls token / positional embedding
    p["cls_token"] = w(ks[1], (1, dim), 1.0)
    p["pos_embed"] = w(ks[2], (1, N + 1, dim), 1.0)
    # transformer layers (stacked along depth); matmul weights in bf16
    p["wqkv"] = w(ks[3], (depth, dim, 3 * inner), dtype=bf16)
    p["wo"] = w(ks[4], (depth, inner, dim), dtype=bf16)
    p["bo"] = jnp.zeros((depth, 1, dim), jnp.float32)
    p["ga"] = jnp.ones((depth, 1, dim), jnp.float32)
    p["ba"] = jnp.zeros((depth, 1, dim), jnp.float32)
    p["w1"] = w(ks[5], (depth, dim, mlp_dim), dtype=bf16)
    p["b1"] = jnp.zeros((depth, 1, mlp_dim), jnp.float32)
    p["w2"] = w(ks[6], (depth, mlp_dim, dim), dtype=bf16)
    p["b2"] = jnp.zeros((depth, 1, dim), jnp.float32)
    p["gf"] = jnp.ones((depth, 1, dim), jnp.float32)
    p["bf"] = jnp.zeros((depth, 1, dim), jnp.float32)
    # classifier: LayerNorm(dim), Linear(dim, num_classes)  (tiny -> keep f32)
    p["hn_g"] = jnp.ones((1, dim), jnp.float32)
    p["hn_b"] = jnp.zeros((1, dim), jnp.float32)
    p["head_w"] = w(ks[7], (dim, num_classes))
    p["head_b"] = jnp.zeros((1, num_classes), jnp.float32)
    return p


# ---------------------------------------------------------------------------
# Pure-JAX reference (same math / same bf16 matmul convention) for a cross-check
# ---------------------------------------------------------------------------
def vit1d_reference(x, params, *, patch_size, heads, dim_head):
    B, C, L = x.shape
    N = L // patch_size
    patch_dim = C * patch_size
    dim = params["pe_w"].shape[1]
    depth = params["wqkv"].shape[0]
    inner = heads * dim_head
    scale = dim_head ** -0.5

    xr = x.reshape(B, C, N, patch_size).transpose(0, 2, 3, 1).reshape(B, N, patch_dim)
    t = _layernorm(xr, params["pe_g1"], params["pe_b1"])
    t = _bf16_matmul(t, params["pe_w"]) + params["pe_b"]
    t = _layernorm(t, params["pe_g2"], params["pe_b2"])
    cls = jnp.broadcast_to(params["cls_token"][None], (B, 1, dim))
    h = jnp.concatenate([cls, t], axis=1) + params["pos_embed"][:, :N + 1]
    for l in range(depth):
        qkv = _bf16_matmul(h, params["wqkv"][l])
        q, k, v = jnp.split(qkv, 3, axis=-1)
        sh = lambda a: a.reshape(B, N + 1, heads, dim_head).transpose(0, 2, 1, 3)
        q, k, v = sh(q), sh(k), sh(v)
        dots = jnp.einsum("bhnd,bhmd->bhnm", q, k) * scale
        attn = jax.nn.softmax(dots, axis=-1)
        o = jnp.einsum("bhnm,bhmd->bhnd", attn, v)
        o = o.transpose(0, 2, 1, 3).reshape(B, N + 1, inner)
        o = _bf16_matmul(o, params["wo"][l]) + params["bo"][l]
        h = h + _layernorm(o, params["ga"][l], params["ba"][l])
        f = jax.nn.gelu(_bf16_matmul(h, params["w1"][l]) + params["b1"][l],
                        approximate=False)
        f = _bf16_matmul(f, params["w2"][l]) + params["b2"][l]
        h = h + _layernorm(f, params["gf"][l], params["bf"][l])
    c = _layernorm(h[:, 0], params["hn_g"], params["hn_b"])
    return c @ params["head_w"] + params["head_b"]


if __name__ == "__main__":
    # Small shapes consistent with ViT1d(channels, seq_len, patch_size, num_classes, ...)
    B, C, L, P = 2, 4, 16, 4
    dim, depth, heads, dim_head, mlp_dim, num_classes = 32, 2, 4, 8, 64, 10

    key = jax.random.PRNGKey(0)
    kx, kp = jax.random.split(key)
    x = jax.random.normal(kx, (B, C, L), dtype=jnp.float32)
    params = init_params(kp, channels=C, seq_len=L, patch_size=P,
                         num_classes=num_classes, dim=dim, depth=depth,
                         heads=heads, dim_head=dim_head, mlp_dim=mlp_dim)

    out = vit1d_forward(x, params, patch_size=P, heads=heads, dim_head=dim_head)
    out = jax.block_until_ready(out)
    assert out.shape == (B, num_classes)

    ref = vit1d_reference(x, params, patch_size=P, heads=heads, dim_head=dim_head)
    if not jnp.allclose(out, ref, atol=1e-2, rtol=1e-2):
        raise AssertionError("Pallas output does not match pure-JAX reference")

    print("KERNEL_OK")
</pallas_src>

<mosaic_0001>
module attributes {stable_mosaic.version = 11 : i64} {
  func.func @patch_embed_kernel(%arg0: i32, %arg1: memref<8x16xf32, #tpu.memory_space<vmem>>, %arg2: memref<1x16xf32, #tpu.memory_space<vmem>>, %arg3: memref<1x16xf32, #tpu.memory_space<vmem>>, %arg4: memref<16x32xbf16, #tpu.memory_space<vmem>>, %arg5: memref<1x32xf32, #tpu.memory_space<vmem>>, %arg6: memref<1x32xf32, #tpu.memory_space<vmem>>, %arg7: memref<1x32xf32, #tpu.memory_space<vmem>>, %arg8: memref<8x32xf32, #tpu.memory_space<vmem>>) attributes {dimension_semantics = [#tpu.dimension_semantics<parallel>], iteration_bounds = array<i64: 1>, scalar_prefetch = 0 : i64, scratch_operands = 0 : i64, tpu.core_type = #tpu.core_type<tc>, window_params = [{transform_indices = @transform_0, window_bounds = array<i64: 8, 16>}, {pipeline_mode = #tpu.pipeline_mode<synchronous>, transform_indices = @transform_1, window_bounds = array<i64: 1, 16>}, {pipeline_mode = #tpu.pipeline_mode<synchronous>, transform_indices = @transform_2, window_bounds = array<i64: 1, 16>}, {pipeline_mode = #tpu.pipeline_mode<synchronous>, transform_indices = @transform_3, window_bounds = array<i64: 16, 32>}, {pipeline_mode = #tpu.pipeline_mode<synchronous>, transform_indices = @transform_4, window_bounds = array<i64: 1, 32>}, {pipeline_mode = #tpu.pipeline_mode<synchronous>, transform_indices = @transform_5, window_bounds = array<i64: 1, 32>}, {pipeline_mode = #tpu.pipeline_mode<synchronous>, transform_indices = @transform_6, window_bounds = array<i64: 1, 32>}, {transform_indices = @transform_7, window_bounds = array<i64: 8, 32>}]} {
    %c0 = arith.constant 0 : index
    %c0_0 = arith.constant 0 : index
    %0 = vector.load %arg1[%c0, %c0_0] : memref<8x16xf32, #tpu.memory_space<vmem>>, vector<8x16xf32>
    %c0_1 = arith.constant 0 : index
    %c0_2 = arith.constant 0 : index
    %1 = vector.load %arg2[%c0_1, %c0_2] : memref<1x16xf32, #tpu.memory_space<vmem>>, vector<1x16xf32>
    %c0_3 = arith.constant 0 : index
    %c0_4 = arith.constant 0 : index
    %2 = vector.load %arg3[%c0_3, %c0_4] : memref<1x16xf32, #tpu.memory_space<vmem>>, vector<1x16xf32>
    %cst = arith.constant dense<0.000000e+00> : vector<8xf32>
    %3 = vector.multi_reduction <add>, %0, %cst [1] : vector<8x16xf32> to vector<8xf32>
    %4 = vector.shape_cast %3 : vector<8xf32> to vector<8x1xf32>
    %cst_5 = arith.constant 1.600000e+01 : f32
    %5 = vector.broadcast %cst_5 : f32 to vector<8x1xf32>
    %6 = arith.divf %4, %5 : vector<8x1xf32>
    %7 = vector.broadcast %6 : vector<8x1xf32> to vector<8x16xf32>
    %8 = arith.subf %0, %7 : vector<8x16xf32>
    %9 = arith.mulf %8, %8 : vector<8x16xf32>
    %cst_6 = arith.constant dense<0.000000e+00> : vector<8xf32>
    %10 = vector.multi_reduction <add>, %9, %cst_6 [1] : vector<8x16xf32> to vector<8xf32>
    %11 = vector.shape_cast %10 : vector<8xf32> to vector<8x1xf32>
    %cst_7 = arith.constant 1.600000e+01 : f32
    %12 = vector.broadcast %cst_7 : f32 to vector<8x1xf32>
    %13 = arith.divf %11, %12 : vector<8x1xf32>
    %14 = vector.broadcast %6 : vector<8x1xf32> to vector<8x16xf32>
    %15 = arith.subf %0, %14 : vector<8x16xf32>
    %cst_8 = arith.constant 9.99999974E-6 : f32
    %16 = vector.broadcast %cst_8 : f32 to vector<8x1xf32>
    %17 = arith.addf %13, %16 : vector<8x1xf32>
    %18 = math.rsqrt %17 : vector<8x1xf32>
    %19 = vector.broadcast %18 : vector<8x1xf32> to vector<8x16xf32>
    %20 = arith.mulf %15, %19 : vector<8x16xf32>
    %21 = vector.broadcast %1 : vector<1x16xf32> to vector<8x16xf32>
    %22 = arith.mulf %20, %21 : vector<8x16xf32>
    %23 = vector.broadcast %2 : vector<1x16xf32> to vector<8x16xf32>
    %24 = arith.addf %22, %23 : vector<8x16xf32>
    %c0_9 = arith.constant 0 : index
    %c0_10 = arith.constant 0 : index
    %25 = vector.load %arg4[%c0_9, %c0_10] : memref<16x32xbf16, #tpu.memory_space<vmem>>, vector<16x32xbf16>
    %26 = arith.truncf %24 : vector<8x16xf32> to vector<8x16xbf16>
    %cst_11 = arith.constant dense<0.000000e+00> : vector<8x32xf32>
    %27 = tpu.matmul %26, %25, %cst_11 {dimension_numbers = #tpu.dot_dimension_numbers<[1], [0], [0], [1], [0, 0, 1, 1], [], []>} : vector<8x16xbf16>, vector<16x32xbf16>, vector<8x32xf32> -> vector<8x32xf32>
    %c0_12 = arith.constant 0 : index
    %c0_13 = arith.constant 0 : index
    %28 = vector.load %arg5[%c0_12, %c0_13] : memref<1x32xf32, #tpu.memory_space<vmem>>, vector<1x32xf32>
    %29 = vector.broadcast %28 : vector<1x32xf32> to vector<8x32xf32>
    %30 = arith.addf %27, %29 : vector<8x32xf32>
    %c0_14 = arith.constant 0 : index
    %c0_15 = arith.constant 0 : index
    %31 = vector.load %arg6[%c0_14, %c0_15] : memref<1x32xf32, #tpu.memory_space<vmem>>, vector<1x32xf32>
    %c0_16 = arith.constant 0 : index
    %c0_17 = arith.constant 0 : index
    %32 = vector.load %arg7[%c0_16, %c0_17] : memref<1x32xf32, #tpu.memory_space<vmem>>, vector<1x32xf32>
    %cst_18 = arith.constant dense<0.000000e+00> : vector<8xf32>
    %33 = vector.multi_reduction <add>, %30, %cst_18 [1] : vector<8x32xf32> to vector<8xf32>
    %34 = vector.shape_cast %33 : vector<8xf32> to vector<8x1xf32>
    %cst_19 = arith.constant 3.200000e+01 : f32
    %35 = vector.broadcast %cst_19 : f32 to vector<8x1xf32>
    %36 = arith.divf %34, %35 : vector<8x1xf32>
    %37 = vector.broadcast %36 : vector<8x1xf32> to vector<8x32xf32>
    %38 = arith.subf %30, %37 : vector<8x32xf32>
    %39 = arith.mulf %38, %38 : vector<8x32xf32>
    %cst_20 = arith.constant dense<0.000000e+00> : vector<8xf32>
    %40 = vector.multi_reduction <add>, %39, %cst_20 [1] : vector<8x32xf32> to vector<8xf32>
    %41 = vector.shape_cast %40 : vector<8xf32> to vector<8x1xf32>
    %cst_21 = arith.constant 3.200000e+01 : f32
    %42 = vector.broadcast %cst_21 : f32 to vector<8x1xf32>
    %43 = arith.divf %41, %42 : vector<8x1xf32>
    %44 = vector.broadcast %36 : vector<8x1xf32> to vector<8x32xf32>
    %45 = arith.subf %30, %44 : vector<8x32xf32>
    %cst_22 = arith.constant 9.99999974E-6 : f32
    %46 = vector.broadcast %cst_22 : f32 to vector<8x1xf32>
    %47 = arith.addf %43, %46 : vector<8x1xf32>
    %48 = math.rsqrt %47 : vector<8x1xf32>
    %49 = vector.broadcast %48 : vector<8x1xf32> to vector<8x32xf32>
    %50 = arith.mulf %45, %49 : vector<8x32xf32>
    %51 = vector.broadcast %31 : vector<1x32xf32> to vector<8x32xf32>
    %52 = arith.mulf %50, %51 : vector<8x32xf32>
    %53 = vector.broadcast %32 : vector<1x32xf32> to vector<8x32xf32>
    %54 = arith.addf %52, %53 : vector<8x32xf32>
    %c0_23 = arith.constant 0 : index
    %c0_24 = arith.constant 0 : index
    %55 = vector.load %arg8[%c0_23, %c0_24] : memref<8x32xf32, #tpu.memory_space<vmem>>, vector<8x32xf32>
    tpu.vector_store %arg8[%c0_23, %c0_24], %54 {strides = array<i32>} : memref<8x32xf32, #tpu.memory_space<vmem>>, vector<8x32xf32>,
    return
  }
  func.func @transform_0(%arg0: i32) -> (i32, i32) {
    %c0_i32 = arith.constant 0 : i32
    %c0_i32_0 = arith.constant 0 : i32
    return %arg0, %c0_i32 : i32, i32
  }
  func.func @transform_1(%arg0: i32) -> (i32, i32) {
    %c0_i32 = arith.constant 0 : i32
    %c0_i32_0 = arith.constant 0 : i32
    %c0_i32_1 = arith.constant 0 : i32
    return %c0_i32, %c0_i32_0 : i32, i32
  }
  func.func @transform_2(%arg0: i32) -> (i32, i32) {
    %c0_i32 = arith.constant 0 : i32
    %c0_i32_0 = arith.constant 0 : i32
    %c0_i32_1 = arith.constant 0 : i32
    return %c0_i32, %c0_i32_0 : i32, i32
  }
  func.func @transform_3(%arg0: i32) -> (i32, i32) {
    %c0_i32 = arith.constant 0 : i32
    %c0_i32_0 = arith.constant 0 : i32
    %c0_i32_1 = arith.constant 0 : i32
    return %c0_i32, %c0_i32_0 : i32, i32
  }
  func.func @transform_4(%arg0: i32) -> (i32, i32) {
    %c0_i32 = arith.constant 0 : i32
    %c0_i32_0 = arith.constant 0 : i32
    %c0_i32_1 = arith.constant 0 : i32
    return %c0_i32, %c0_i32_0 : i32, i32
  }
  func.func @transform_5(%arg0: i32) -> (i32, i32) {
    %c0_i32 = arith.constant 0 : i32
    %c0_i32_0 = arith.constant 0 : i32
    %c0_i32_1 = arith.constant 0 : i32
    return %c0_i32, %c0_i32_0 : i32, i32
  }
  func.func @transform_6(%arg0: i32) -> (i32, i32) {
    %c0_i32 = arith.constant 0 : i32
    %c0_i32_0 = arith.constant 0 : i32
    %c0_i32_1 = arith.constant 0 : i32
    return %c0_i32, %c0_i32_0 : i32, i32
  }
  func.func @transform_7(%arg0: i32) -> (i32, i32) {
    %c0_i32 = arith.constant 0 : i32
    %c0_i32_0 = arith.constant 0 : i32
    return %arg0, %c0_i32 : i32, i32
  }
}

</mosaic_0001>

<llo_original>
// kernel: tpu_custom_call.1
$region0: #{tpu_custom_call.1}
  #allocation0 [shape = 'u32[]', space=smem, size = 0x4, offset = 0x4, fixed_abs, tag = 'smem constant byte address 0x4 - core index']
  #allocation1 [shape = 'u32[72,128]{1,0:T(1,128)}', space=vmem, size = 0x9000, scoped, tag = 'internal scratch']
  %s0 = inlined_call_operand.hbm [shape: f32[8,16], index: 0, kind: input, shape index: {}]
  %s1 = inlined_call_operand.hbm [shape: f32[1,16], index: 1, kind: input, shape index: {}]
  %s2 = inlined_call_operand.vmem [shape: f32[1,16], index: 2, kind: input, shape index: {}]
  %s3 = inlined_call_operand.hbm [shape: bf16[16,32], index: 3, kind: input, shape index: {}]
  %s4 = inlined_call_operand.vmem [shape: f32[1,32], index: 4, kind: input, shape index: {}]
  %s5 = inlined_call_operand.vmem [shape: f32[1,32], index: 5, kind: input, shape index: {}]
  %s6 = inlined_call_operand.vmem [shape: f32[1,32], index: 6, kind: input, shape index: {}]
  %s7 = inlined_call_operand.hbm [shape: f32[8,32], index: 7, kind: output, shape index: {}]
  %s8 = sld [smem:[#allocation0]]
  $region50: #{tpu_custom_call.1} parent=0
    _
  %s10 = ssub.s32 1, %s8
  %s11 = scalar_select 0, %s10, %s8
  $region1: #{tpu_custom_call.1} parent=0
    #allocation2 [shape = 'u8[4096]{0}', space=vmem, size = 0x1000, scoped, tag = 'input window, operand 0, single buffered']
    #allocation3 [shape = 's32[1]{0}', space=sflag, size = 0x4, scoped, tag = 'scoped memory for tpu_custom_call.1']
    #allocation4 [shape = 's32[1]{0}', space=sflag, size = 0x4, scoped, tag = 'scoped memory for tpu_custom_call.1']
    #allocation5 [shape = 'u8[512]{0}', space=vmem, size = 0x400, scoped, tag = 'input window, operand 1, single buffered']
    #allocation6 [shape = 's32[1]{0}', space=sflag, size = 0x4, scoped, tag = 'scoped memory for tpu_custom_call.1']
    #allocation7 [shape = 'u8[4096]{0}', space=vmem, size = 0x1000, scoped, tag = 'input window, operand 3, single buffered']
    #allocation8 [shape = 'u8[4096]{0}', space=vmem, size = 0x1000, scoped, tag = 'output window, operand 0, single buffered']
    %12 = vsyncpa [#allocation3], 0
    %13 = vsyncpa [#allocation6], 0
    %14 = vsyncpa [#allocation4], 0
    // Predicated region
    $region2: #{tpu_custom_call.1} parent=1 // pred_check
      _
    $region3: #{tpu_custom_call.1} parent=1 // pred_check_branch
      %16 = sbr.rel (0) target = $region5
    $region4: #{tpu_custom_call.1} parent=1 // pred_region
      %18 = vsyncadd [#allocation3], 0
      %s20 = sshll.u32 %s0, 4
      %s21 = int_to_ptr.hbm [resolvable:$true] %s20
      %s22 = sshll.u32 [#allocation2], 4
      %s23 = int_to_ptr.vmem [resolvable:$true] %s22
      %25 = dma.hbm_to_vmem [thread:$0]  %s21, 128, %s23, [#allocation3]
    $region5: #{tpu_custom_call.1} parent=1 // pred_fallthru
      _
    // Predicated region
    $region6: #{tpu_custom_call.1} parent=1 // pred_check
      _
    $region7: #{tpu_custom_call.1} parent=1 // pred_check_branch
      %27 = sbr.rel (0) target = $region9
    $region8: #{tpu_custom_call.1} parent=1 // pred_region
      %29 = vsyncadd [#allocation6], 0
      %s31 = sshll.u32 %s1, 4
      %s32 = int_to_ptr.hbm [resolvable:$true] %s31
      %s33 = sshll.u32 [#allocation5], 4
      %s34 = int_to_ptr.vmem [resolvable:$true] %s33
      %36 = dma.hbm_to_vmem [thread:$0]  %s32, 16, %s34, [#allocation6]
    $region9: #{tpu_custom_call.1} parent=1 // pred_fallthru
      _
    // Predicated region
    $region10: #{tpu_custom_call.1} parent=1 // pred_check
      _
    $region11: #{tpu_custom_call.1} parent=1 // pred_check_branch
      %38 = sbr.rel (0) target = $region13
    $region12: #{tpu_custom_call.1} parent=1 // pred_region
      _
    $region13: #{tpu_custom_call.1} parent=1 // pred_fallthru
      _
    // Predicated region
    $region14: #{tpu_custom_call.1} parent=1 // pred_check
      _
    $region15: #{tpu_custom_call.1} parent=1 // pred_check_branch
      %40 = sbr.rel (0) target = $region17
    $region16: #{tpu_custom_call.1} parent=1 // pred_region
      %42 = vsyncadd [#allocation6], 0
      %s43 = sshll.u32 %s3, 4
      %s44 = int_to_ptr.hbm [resolvable:$true] %s43
      %s45 = sshll.u32 [#allocation7], 4
      %s46 = int_to_ptr.vmem [resolvable:$true] %s45
      %51 = dma.hbm_to_vmem [thread:$0]  %s44, 128, %s46, [#allocation6], 64, 64, 4
    $region17: #{tpu_custom_call.1} parent=1 // pred_fallthru
      _
    // Predicated region
    $region18: #{tpu_custom_call.1} parent=1 // pred_check
      _
    $region19: #{tpu_custom_call.1} parent=1 // pred_check_branch
      %53 = sbr.rel (0) target = $region21
    $region20: #{tpu_custom_call.1} parent=1 // pred_region
      _
    $region21: #{tpu_custom_call.1} parent=1 // pred_fallthru
      _
    // Predicated region
    $region22: #{tpu_custom_call.1} parent=1 // pred_check
      _
    $region23: #{tpu_custom_call.1} parent=1 // pred_check_branch
      %55 = sbr.rel (0) target = $region25
    $region24: #{tpu_custom_call.1} parent=1 // pred_region
      _
    $region25: #{tpu_custom_call.1} parent=1 // pred_fallthru
      _
    // Predicated region
    $region26: #{tpu_custom_call.1} parent=1 // pred_check
      _
    $region27: #{tpu_custom_call.1} parent=1 // pred_check_branch
      %57 = sbr.rel (0) target = $region29
    $region28: #{tpu_custom_call.1} parent=1 // pred_region
      _
    $region29: #{tpu_custom_call.1} parent=1 // pred_fallthru
      _
    // Predicated region
    $region30: #{tpu_custom_call.1} parent=1 // pred_check
      _
    $region31: #{tpu_custom_call.1} parent=1 // pred_check_branch
      %59 = sbr.rel (0) target = $region33
    $region32: #{tpu_custom_call.1} parent=1 // pred_region
      %61 = dma.done [#allocation3], 128
    $region33: #{tpu_custom_call.1} parent=1 // pred_fallthru
      _
    // Predicated region
    $region34: #{tpu_custom_call.1} parent=1 // pred_check
      _
    $region35: #{tpu_custom_call.1} parent=1 // pred_check_branch
      %63 = sbr.rel (0) target = $region37
    $region36: #{tpu_custom_call.1} parent=1 // pred_region
      %65 = dma.done [#allocation6], 16
    $region37: #{tpu_custom_call.1} parent=1 // pred_fallthru
      _
    // Predicated region
    $region38: #{tpu_custom_call.1} parent=1 // pred_check
      _
    $region39: #{tpu_custom_call.1} parent=1 // pred_check_branch
      %67 = sbr.rel (0) target = $region41
    $region40: #{tpu_custom_call.1} parent=1 // pred_region
      %69 = dma.done [#allocation6], 128
    $region41: #{tpu_custom_call.1} parent=1 // pred_fallthru
      _
    %v71 = vld [vmem:[#allocation2] sm:$0xff]
    %v72 = vld [vmem:[#allocation5] sm:$0x1]
    %v73 = vld [vmem:[%s2] sm:$0x1]
    %vm74 = vcmask 130048
    %v75 = vsel %vm74, %v71, 0.0
    %76 = vadd.xlane.f32.xlu0 %v75
    %v77 = vpop.xlane.xlu0 %76
    %v78 = vrcp.pop 16.0
    %v79 = vmul.f32 16.0, %v78
    %v80 = vsub.f32 1.0, %v79
    %v81 = vmul.f32 %v78, %v80
    %v82 = vadd.f32 %v78, %v81
    %vm83 = vweird.f32 %v78
    %v84 = vsel %vm83, %v78, %v82
    %v85 = vmul.f32 %v77, %v84
    %v86 = vsub.f32 %v71, %v85
    %v87 = vmul.f32 %v86, %v86
    %v88 = vsel %vm74, %v87, 0.0
    %89 = vadd.xlane.f32.xlu0 %v88
    %v90 = vpop.xlane.xlu0 %89
    %v91 = vmul.f32 %v90, %v84
    %v92 = vadd.f32 %v91, 1e-05
    %v93 = vrsqrt.pop %v92
    %v94 = vmul.f32 %v93, %v92
    %v95 = vmul.f32 %v94, %v93
    %v96 = vmul.f32 0.5, %v95
    %v97 = vsub.f32 1.5, %v96
    %v98 = vmul.f32 %v93, %v97
    %vm99 = vweird.f32 %v92
    %vm100 = vweird.f32 %v93
    %vm101 = vmor %vm99, %vm100
    %v102 = vsel %vm101, %v93, %v98
    %v103 = vmul.f32 %v86, %v102
    %v105 = vperm.slane %v72, 0
    %v107 = vmul.f32 %v103, %v105
    %v109 = vperm.slane %v73, 0
    %v111 = vadd.f32 %v107, %v109
    %v112 = vld [vmem:[#allocation7] sm:$0xf]
    %v113 = vld [vmem:[#allocation7 + $0x4] sm:$0xf]
    %v114 = vpack.c.bf16 %v111, %v111
    %v115 = vld [vmem:[%s4] sm:$0x1]
    %v117 = vperm.slane %v115, 0
    %v121 = vunpack.c.l.b16 %v112
    %v122 = vunpack.c.l.b16 %v113
    %v123 = vpack.c.b16 %v122, %v121
    %v126 = vsel %vm74, %v114, 0
    %128 = vmatpush.bf16.msra.mxu0 0
    %129 = vmatpush.bf16.msra.mxu0 0
    %130 = vmatpush.bf16.msra.mxu0 0
    %131 = vmatpush.bf16.msra.mxu0 0
    %132 = vmatpush.bf16.msra.mxu0 0
    %133 = vmatpush.bf16.msra.mxu0 0
    %134 = vmatpush.bf16.msra.mxu0 0
    %135 = vmatpush.bf16.msra.mxu0 %v123
    %136 = vmatmul.bf16.gmra.mxu0 %v126
    %v137 = vpop.f32.mrf.mxu0
    %v138 = vadd.f32 %v117, %v137
    %v139 = vpop.f32.mrf.mxu0
    %140 = vdwg.mxu0
    %v141 = vld [vmem:[%s5] sm:$0x1]
    %v142 = vld [vmem:[%s6] sm:$0x1]
    %vm143 = vcmask 261120
    %v144 = vsel %vm143, %v138, 0.0
    %145 = vadd.xlane.f32.xlu0 %v144
    %v146 = vpop.xlane.xlu0 %145
    %v147 = vrcp.pop 32.0
    %v148 = vmul.f32 32.0, %v147
    %v149 = vsub.f32 1.0, %v148
    %v150 = vmul.f32 %v147, %v149
    %v151 = vadd.f32 %v147, %v150
    %vm152 = vweird.f32 %v147
    %v153 = vsel %vm152, %v147, %v151
    %v154 = vmul.f32 %v146, %v153
    %v155 = vsub.f32 %v138, %v154
    %v156 = vmul.f32 %v155, %v155
    %v157 = vsel %vm143, %v156, 0.0
    %158 = vadd.xlane.f32.xlu0 %v157
    %v159 = vpop.xlane.xlu0 %158
    %v160 = vmul.f32 %v159, %v153
    %v161 = vadd.f32 %v160, 1e-05
    %v162 = vrsqrt.pop %v161
    %v163 = vmul.f32 %v162, %v161
    %v164 = vmul.f32 %v163, %v162
    %v165 = vmul.f32 0.5, %v164
    %v166 = vsub.f32 1.5, %v165
    %v167 = vmul.f32 %v162, %v166
    %vm168 = vweird.f32 %v161
    %vm169 = vweird.f32 %v162
    %vm170 = vmor %vm168, %vm169
    %v171 = vsel %vm170, %v162, %v167
    %v172 = vmul.f32 %v155, %v171
    %v174 = vperm.slane %v141, 0
    %v176 = vmul.f32 %v172, %v174
    %v178 = vperm.slane %v142, 0
    %v180 = vadd.f32 %v176, %v178
    %181 = vst.msk [vmem:[#allocation8] sm:$0xff] %vm143, %v180
    // Predicated region
    $region42: #{tpu_custom_call.1} parent=1 // pred_check
      _
    $region43: #{tpu_custom_call.1} parent=1 // pred_check_branch
      %183 = sbr.rel (0) target = $region45
    $region44: #{tpu_custom_call.1} parent=1 // pred_region
      %185 = vsyncadd [#allocation4], 0
      %s187 = sshll.u32 [#allocation8], 4
      %s188 = int_to_ptr.vmem [resolvable:$true] %s187
      %s189 = sshll.u32 %s7, 4
      %s190 = int_to_ptr.hbm [resolvable:$true] %s189
      %192 = dma.vmem_to_hbm [thread:$0]  %s188, 128, %s190, [#allocation4]
    $region45: #{tpu_custom_call.1} parent=1 // pred_fallthru
      _
    // Predicated region
    $region46: #{tpu_custom_call.1} parent=1 // pred_check
      _
    $region47: #{tpu_custom_call.1} parent=1 // pred_check_branch
      %194 = sbr.rel (0) target = $region49
    $region48: #{tpu_custom_call.1} parent=1 // pred_region
      %196 = dma.done [#allocation4], 128
    $region49: #{tpu_custom_call.1} parent=1 // pred_fallthru
      _
    %197 = vsyncpa [#allocation3], 1
    %198 = vsyncpa [#allocation6], 1
    %199 = vsyncpa [#allocation4], 1

</llo_original>
